<compile_context>
chip_gen: v7x
topology: tpu7x:2x2x1
jax: 0.10.0
libtpu: 0.0.40
codegen_flags: <defaults>
</compile_context>

<pallas_src>
import functools

import jax
import jax.numpy as jnp
from jax.experimental import pallas as pl
from jax.experimental.pallas import tpu as pltpu

_LANE = 128        # vreg lane width: pad categories so output stores are unmasked vst
_SUBLANE = 8       # f32 sublane granularity for row tiles
_NEG = -1e30       # bias for padded category lanes: exp() underflows to 0, no NaNs
_MIN_GRID_STEPS = 2  # give both v7x TensorCores work; negligible cost on v5e/v6e


def _round_up(x, m):
    return (x + m - 1) // m * m


def _physical_vmem_bytes():
    try:
        return int(pltpu.get_tpu_info().vmem_capacity_bytes)
    except Exception:
        return 64 << 20  # conservative default (v7x per-TensorCore VMEM)


# ~48 MiB on v7x (64 MiB physical), ~96 MiB on v5e/v6e (128 MiB physical).
_VMEM_CAP_BYTES = _physical_vmem_bytes() * 3 // 4


def _choose_tb(batch, tb_max):
    """Row tile: multiple of the f32 sublane, <= tb_max, and sized so the 1-D parallel
    grid has at least _MIN_GRID_STEPS steps whenever the batch is large enough."""
    tb_max = max(_SUBLANE, _round_up(tb_max, _SUBLANE))
    rows = _round_up(batch, _SUBLANE)
    steps = max(_MIN_GRID_STEPS, pl.cdiv(rows, tb_max))
    tb = min(tb_max, _round_up(pl.cdiv(rows, steps), _SUBLANE))
    return max(tb, _SUBLANE)


def _vmem_limit_bytes(tb, d_in, d_out_pad, w_itemsize):
    # Single-counted footprint (weight/bias single-buffered; x and output double-
    # buffered by the pipeline; plus in-kernel f32 temporaries), then ~30% headroom.
    footprint = (
        d_in * d_out_pad * w_itemsize      # resident bf16 weight (Buffered(1))
        + d_out_pad * 4                    # resident bias
        + 2 * tb * d_in * 4                # x tile, double-buffered
        + 2 * tb * d_out_pad * 4           # norm_logits tile, double-buffered
        + 3 * tb * d_out_pad * 4           # in-kernel f32 temporaries (logits / e / etc.)
    )
    limit = int(footprint * 1.3)
    return max(min(limit, _VMEM_CAP_BYTES), 4 << 20)


def categorical_kernel(x_ref, w_ref, b_ref, logits_ref):
    # One (tb, d_in) x (d_in, d_out_pad) matmul on the MXU with bf16 operands and f32
    # accumulation, then a row-wise numerically-stable log-softmax.  Padded category
    # lanes carry a -1e30 bias, so they vanish from the row max / sum.  Only the
    # normalized logits are written back; probs = exp(.) is computed by the caller.
    x = x_ref[...].astype(w_ref.dtype)
    logits = jnp.dot(x, w_ref[...], preferred_element_type=jnp.float32) + b_ref[...]
    m = jnp.max(logits, axis=-1, keepdims=True)
    e = jnp.exp(logits - m)
    s = jnp.sum(e, axis=-1, keepdims=True)
    logits_ref[...] = (logits - (m + jnp.log(s))).astype(logits_ref.dtype)


def prepare_params(weight, bias):
    """One-time parameter prep (call at module init, NOT per forward).

    - stores the weight pre-transposed as (d_in, d_out_pad) in bf16: MXU-native operand,
      half the DMA bytes, no per-call XLA transpose,
    - pads the category axis to a multiple of 128 lanes so kernel stores are lane-dense;
      padded lanes get bias=-1e30 (f32) so they contribute nothing to the row max / sum.
    """
    d_out, d_in = weight.shape
    d_out_pad = _round_up(d_out, _LANE)
    w_t = jnp.zeros((d_in, d_out_pad), jnp.bfloat16)
    w_t = w_t.at[:, :d_out].set(weight.T.astype(jnp.bfloat16))
    b_pad = jnp.full((1, d_out_pad), _NEG, jnp.float32)
    b_pad = b_pad.at[0, :d_out].set(bias.astype(jnp.float32))
    return w_t, b_pad


@functools.partial(jax.jit, static_argnames=("d_out", "tb_max"))
def categorical_forward(x, w_t, b_pad, *, d_out, tb_max=512):
    """x: (B, d_in) f32.  w_t: (d_in, d_out_pad) bf16 pre-transposed/padded weight.
    b_pad: (1, d_out_pad) f32.  Returns (normalized logits, probs), each (B, d_out)."""
    B, d_in = x.shape
    d_out_pad = w_t.shape[1]

    tb = _choose_tb(B, tb_max)
    grid = (pl.cdiv(B, tb),)            # ragged last block: no wrapper-side row padding

    vmem_limit = _vmem_limit_bytes(tb, d_in, d_out_pad, w_t.dtype.itemsize)

    cost = pl.CostEstimate(
        flops=2 * B * d_in * d_out_pad,
        transcendentals=B * d_out_pad + B,                  # exp over tile + per-row log
        bytes_accessed=(4 * B * d_in                        # x read (f32)
                        + d_in * d_out_pad * w_t.dtype.itemsize   # bf16 weight
                        + 4 * d_out_pad                     # bias
                        + 4 * B * d_out_pad),               # single f32 output
    )

    norm_logits_pad = pl.pallas_call(
        categorical_kernel,
        out_shape=jax.ShapeDtypeStruct((B, d_out_pad), jnp.float32),
        grid=grid,
        in_specs=[
            pl.BlockSpec((tb, d_in), lambda i: (i, 0)),
            pl.BlockSpec((d_in, d_out_pad), lambda i: (0, 0),
                         pipeline_mode=pl.Buffered(1)),      # grid-invariant: 1 buffer
            pl.BlockSpec((1, d_out_pad), lambda i: (0, 0),
                         pipeline_mode=pl.Buffered(1)),
        ],
        out_specs=pl.BlockSpec((tb, d_out_pad), lambda i: (i, 0)),
        compiler_params=pltpu.CompilerParams(
            dimension_semantics=("parallel",),
            vmem_limit_bytes=vmem_limit,
        ),
        cost_estimate=cost,
    )(x, w_t, b_pad)

    # Lane-unpad + probs: both fuse into a single cheap XLA pass under jit.
    norm_logits = norm_logits_pad[:, :d_out]
    probs = jnp.exp(norm_logits)
    return norm_logits, probs


if __name__ == "__main__":
    key = jax.random.PRNGKey(0)
    k_x, k_w, k_x2 = jax.random.split(key, 3)

    batch, num_inputs, num_outputs = 8, 32, 16

    # Deterministic params mirroring the module's __init__:
    #   nn.init.orthogonal_(weight, gain=0.01); nn.init.constant_(bias, 0)
    ortho = jax.nn.initializers.orthogonal(scale=0.01)
    weight = ortho(k_w, (num_outputs, num_inputs), jnp.float32)  # PyTorch Linear layout
    bias = jnp.zeros((num_outputs,), jnp.float32)
    w_t, b_pad = prepare_params(weight, bias)   # one-time prep, outside the hot path

    def reference(xr, w):
        raw = xr @ w.T + bias
        lse = jax.scipy.special.logsumexp(raw, axis=-1, keepdims=True)
        return raw - lse, jax.nn.softmax(raw, axis=-1)

    # The kernel uses bf16 matmul operands with f32 accumulation, so the tight reference
    # rounds the operands to bf16 the same way; a looser check against the pure-f32
    # module confirms the bf16 approximation is negligible for this gain=0.01 head.
    w_bf = weight.astype(jnp.bfloat16).astype(jnp.float32)

    # Small shape: single grid step.
    x = jax.random.normal(k_x, (batch, num_inputs), dtype=jnp.float32)
    norm_logits, probs = categorical_forward(x, w_t, b_pad, d_out=num_outputs)
    jax.block_until_ready((norm_logits, probs))
    x_bf = x.astype(jnp.bfloat16).astype(jnp.float32)
    ref_l, ref_p = reference(x_bf, w_bf)
    ref_l32, ref_p32 = reference(x, weight)
    assert norm_logits.shape == (batch, num_outputs) and probs.shape == (batch, num_outputs)
    assert jnp.allclose(norm_logits, ref_l, atol=1e-4), "logits mismatch (bf16 reference)"
    assert jnp.allclose(probs, ref_p, atol=1e-4), "probs mismatch (bf16 reference)"
    assert jnp.allclose(norm_logits, ref_l32, atol=5e-3), "logits mismatch (f32 reference)"
    assert jnp.allclose(probs, ref_p32, atol=5e-3), "probs mismatch (f32 reference)"
    assert jnp.allclose(jnp.sum(probs, axis=-1), 1.0, atol=1e-5), "probs not normalized"

    # Larger, non-divisible batch: exercises the multi-step parallel grid and the
    # ragged (masked) last row block (no wrapper-side padding anymore).
    x2 = jax.random.normal(k_x2, (300, num_inputs), dtype=jnp.float32)
    nl2, p2 = categorical_forward(x2, w_t, b_pad, d_out=num_outputs, tb_max=128)
    jax.block_until_ready((nl2, p2))
    x2_bf = x2.astype(jnp.bfloat16).astype(jnp.float32)
    ref_l2, ref_p2 = reference(x2_bf, w_bf)
    assert nl2.shape == (300, num_outputs) and p2.shape == (300, num_outputs)
    assert jnp.allclose(nl2, ref_l2, atol=1e-4), "logits mismatch (tiled)"
    assert jnp.allclose(p2, ref_p2, atol=1e-4), "probs mismatch (tiled)"
    assert jnp.allclose(jnp.sum(p2, axis=-1), 1.0, atol=1e-5), "probs not normalized (tiled)"

    print("KERNEL_OK")
</pallas_src>

<mosaic_0001>
module attributes {stable_mosaic.version = 11 : i64} {
  func.func @categorical_kernel(%arg0: i32, %arg1: memref<8x32xf32, #tpu.memory_space<vmem>>, %arg2: memref<32x128xbf16, #tpu.memory_space<vmem>>, %arg3: memref<1x128xf32, #tpu.memory_space<vmem>>, %arg4: memref<8x128xf32, #tpu.memory_space<vmem>>) attributes {dimension_semantics = [#tpu.dimension_semantics<parallel>], iteration_bounds = array<i64: 1>, scalar_prefetch = 0 : i64, scratch_operands = 0 : i64, tpu.core_type = #tpu.core_type<tc>, window_params = [{transform_indices = @transform_0, window_bounds = array<i64: 8, 32>}, {pipeline_mode = #tpu.pipeline_mode<synchronous>, transform_indices = @transform_1, window_bounds = array<i64: 32, 128>}, {pipeline_mode = #tpu.pipeline_mode<synchronous>, transform_indices = @transform_2, window_bounds = array<i64: 1, 128>}, {transform_indices = @transform_3, window_bounds = array<i64: 8, 128>}]} {
    %c0 = arith.constant 0 : index
    %c0_0 = arith.constant 0 : index
    %0 = vector.load %arg1[%c0, %c0_0] : memref<8x32xf32, #tpu.memory_space<vmem>>, vector<8x32xf32>
    %1 = arith.truncf %0 : vector<8x32xf32> to vector<8x32xbf16>
    %c0_1 = arith.constant 0 : index
    %c0_2 = arith.constant 0 : index
    %2 = vector.load %arg2[%c0_1, %c0_2] : memref<32x128xbf16, #tpu.memory_space<vmem>>, vector<32x128xbf16>
    %cst = arith.constant dense<0.000000e+00> : vector<8x128xf32>
    %3 = tpu.matmul %1, %2, %cst {dimension_numbers = #tpu.dot_dimension_numbers<[1], [0], [0], [1], [0, 0, 1, 1], [], []>} : vector<8x32xbf16>, vector<32x128xbf16>, vector<8x128xf32> -> vector<8x128xf32>
    %c0_3 = arith.constant 0 : index
    %c0_4 = arith.constant 0 : index
    %4 = vector.load %arg3[%c0_3, %c0_4] : memref<1x128xf32, #tpu.memory_space<vmem>>, vector<1x128xf32>
    %5 = vector.broadcast %4 : vector<1x128xf32> to vector<8x128xf32>
    %6 = arith.addf %3, %5 : vector<8x128xf32>
    %cst_5 = arith.constant dense<0xFF800000> : vector<8xf32>
    %7 = vector.multi_reduction <maximumf>, %6, %cst_5 [1] : vector<8x128xf32> to vector<8xf32>
    %8 = vector.shape_cast %7 : vector<8xf32> to vector<8x1xf32>
    %9 = vector.broadcast %8 : vector<8x1xf32> to vector<8x128xf32>
    %10 = arith.subf %6, %9 : vector<8x128xf32>
    %11 = math.exp %10 : vector<8x128xf32>
    %cst_6 = arith.constant dense<0.000000e+00> : vector<8xf32>
    %12 = vector.multi_reduction <add>, %11, %cst_6 [1] : vector<8x128xf32> to vector<8xf32>
    %13 = vector.shape_cast %12 : vector<8xf32> to vector<8x1xf32>
    %14 = math.log %13 : vector<8x1xf32>
    %15 = arith.addf %8, %14 : vector<8x1xf32>
    %16 = vector.broadcast %15 : vector<8x1xf32> to vector<8x128xf32>
    %17 = arith.subf %6, %16 : vector<8x128xf32>
    %c0_7 = arith.constant 0 : index
    %c0_8 = arith.constant 0 : index
    %18 = vector.load %arg4[%c0_7, %c0_8] : memref<8x128xf32, #tpu.memory_space<vmem>>, vector<8x128xf32>
    tpu.vector_store %arg4[%c0_7, %c0_8], %17 {strides = array<i32>} : memref<8x128xf32, #tpu.memory_space<vmem>>, vector<8x128xf32>,
    return
  }
  func.func @transform_0(%arg0: i32) -> (i32, i32) {
    %c0_i32 = arith.constant 0 : i32
    %c0_i32_0 = arith.constant 0 : i32
    return %arg0, %c0_i32 : i32, i32
  }
  func.func @transform_1(%arg0: i32) -> (i32, i32) {
    %c0_i32 = arith.constant 0 : i32
    %c0_i32_0 = arith.constant 0 : i32
    %c0_i32_1 = arith.constant 0 : i32
    return %c0_i32, %c0_i32_0 : i32, i32
  }
  func.func @transform_2(%arg0: i32) -> (i32, i32) {
    %c0_i32 = arith.constant 0 : i32
    %c0_i32_0 = arith.constant 0 : i32
    %c0_i32_1 = arith.constant 0 : i32
    return %c0_i32, %c0_i32_0 : i32, i32
  }
  func.func @transform_3(%arg0: i32) -> (i32, i32) {
    %c0_i32 = arith.constant 0 : i32
    %c0_i32_0 = arith.constant 0 : i32
    return %arg0, %c0_i32 : i32, i32
  }
}

</mosaic_0001>

<llo_original>
// kernel: categorical_forward.1
$region0: #{categorical_forward.1}
  #allocation0 [shape = 'u32[]', space=smem, size = 0x4, offset = 0x4, fixed_abs, tag = 'smem constant byte address 0x4 - core index']
  #allocation1 [shape = 'u32[144,128]{1,0:T(1,128)}', space=vmem, size = 0x12000, scoped, tag = 'internal scratch']
  %s0 = inlined_call_operand.hbm [shape: f32[8,32], index: 0, kind: input, shape index: {}]
  %s1 = inlined_call_operand.hbm [shape: bf16[32,128], index: 1, kind: input, shape index: {}]
  %s2 = inlined_call_operand.vmem [shape: f32[1,128], index: 2, kind: input, shape index: {}]
  %s3 = inlined_call_operand.vmem [shape: f32[8,128], index: 3, kind: output, shape index: {}]
  %s4 = sld [smem:[#allocation0]]
  $region30: #{categorical_forward.1} parent=0
    _
  %s6 = ssub.s32 1, %s4
  %s7 = scalar_select 0, %s6, %s4
  $region1: #{categorical_forward.1} parent=0
    #allocation2 [shape = 'u8[4096]{0}', space=vmem, size = 0x1000, scoped, tag = 'input window, operand 0, single buffered']
    #allocation3 [shape = 's32[1]{0}', space=sflag, size = 0x4, scoped, tag = 'scoped memory for categorical_forward.1']
    #allocation4 [shape = 'u8[8192]{0}', space=vmem, size = 0x2000, scoped, tag = 'input window, operand 1, single buffered']
    #allocation5 [shape = 's32[1]{0}', space=sflag, size = 0x4, scoped, tag = 'scoped memory for categorical_forward.1']
    %8 = vsyncpa [#allocation3], 0
    %9 = vsyncpa [#allocation5], 0
    // Predicated region
    $region2: #{categorical_forward.1} parent=1 // pred_check
      _
    $region3: #{categorical_forward.1} parent=1 // pred_check_branch
      %11 = sbr.rel (0) target = $region5
    $region4: #{categorical_forward.1} parent=1 // pred_region
      %s13 = ssub.s32 128, 128
      %14 = vsyncadd [#allocation3], %s13
      %s16 = sshll.u32 [#allocation2], 4
      %s17 = int_to_ptr.vmem [resolvable:$true] %s16
      %19 = dma.hbm_to_vmem [thread:$0]  %s0, 128, %s17, [#allocation3]
    $region5: #{categorical_forward.1} parent=1 // pred_fallthru
      _
    // Predicated region
    $region6: #{categorical_forward.1} parent=1 // pred_check
      _
    $region7: #{categorical_forward.1} parent=1 // pred_check_branch
      %21 = sbr.rel (0) target = $region9
    $region8: #{categorical_forward.1} parent=1 // pred_region
      %s23 = ssub.s32 256, 256
      %24 = vsyncadd [#allocation5], %s23
      %s25 = sshll.u32 [#allocation4], 4
      %s26 = int_to_ptr.vmem [resolvable:$true] %s25
      %31 = dma.hbm_to_vmem [thread:$0]  %s1, 256, %s26, [#allocation5], 64, 64, 4
    $region9: #{categorical_forward.1} parent=1 // pred_fallthru
      _
    // Predicated region
    $region10: #{categorical_forward.1} parent=1 // pred_check
      _
    $region11: #{categorical_forward.1} parent=1 // pred_check_branch
      %33 = sbr.rel (0) target = $region13
    $region12: #{categorical_forward.1} parent=1 // pred_region
      _
    $region13: #{categorical_forward.1} parent=1 // pred_fallthru
      _
    // Predicated region
    $region14: #{categorical_forward.1} parent=1 // pred_check
      _
    $region15: #{categorical_forward.1} parent=1 // pred_check_branch
      %35 = sbr.rel (0) target = $region17
    $region16: #{categorical_forward.1} parent=1 // pred_region
      %36 = dma.done [#allocation3], 128
    $region17: #{categorical_forward.1} parent=1 // pred_fallthru
      _
    // Predicated region
    $region18: #{categorical_forward.1} parent=1 // pred_check
      _
    $region19: #{categorical_forward.1} parent=1 // pred_check_branch
      %38 = sbr.rel (0) target = $region21
    $region20: #{categorical_forward.1} parent=1 // pred_region
      %39 = dma.done [#allocation5], 256
    $region21: #{categorical_forward.1} parent=1 // pred_fallthru
      _
    %v41 = vld [vmem:[#allocation2] sm:$0xff]
    %v42 = vpack.c.bf16 %v41, %v41
    %v43 = vld [vmem:[#allocation4] sm:$0xf]
    %v44 = vld [vmem:[#allocation4 + $0x4] sm:$0xf]
    %v45 = vld [vmem:[#allocation4 + $0x8] sm:$0xf]
    %v46 = vld [vmem:[#allocation4 + $0xc] sm:$0xf]
    %v47 = vld [vmem:[%s2] sm:$0x1]
    %v49 = vlaneseq
    %v50 = vshrl.u32 %v49, 7
    %v51 = vsub.s32 0, %v50
    %v52 = vrot.slane %v47, %v51
    %v58 = vunpack.c.l.b16 %v43
    %v59 = vunpack.c.l.b16 %v44
    %v60 = vunpack.c.l.b16 %v45
    %v61 = vunpack.c.l.b16 %v46
    %v62 = vpack.c.b16 %v59, %v58
    %v63 = vpack.c.b16 %v61, %v60
    %vm66 = vcmask 261120
    %v68 = vsel %vm66, %v42, 0
    %70 = vmatprep.subr.bf16.mxu0 0
    %71 = vmatpush1.bf16.msra.mxu0 %v62
    %72 = vmatprep.subr.bf16.mxu0 0
    %73 = vmatpush1.bf16.msra.mxu0 %v63
    %74 = vmatprep.subr.bf16.mxu0 0
    %75 = vmatpush1.bf16.msra.mxu0 0
    %76 = vmatprep.subr.bf16.mxu0 0
    %77 = vmatpush1.bf16.msra.mxu0 0
    %78 = vmatprep.subr.bf16.mxu0 0
    %79 = vmatpush1.bf16.msra.mxu0 0
    %80 = vmatprep.subr.bf16.mxu0 0
    %81 = vmatpush1.bf16.msra.mxu0 0
    %82 = vmatprep.subr.bf16.mxu0 0
    %83 = vmatpush1.bf16.msra.mxu0 0
    %84 = vmatprep.subr.bf16.mxu0 0
    %85 = vmatpush1.bf16.msra.mxu0 0
    %86 = vmatprep.subr.bf16.mxu0 0
    %87 = vmatpush1.bf16.msra.mxu0 0
    %88 = vmatprep.subr.bf16.mxu0 0
    %89 = vmatpush1.bf16.msra.mxu0 0
    %90 = vmatprep.subr.bf16.mxu0 0
    %91 = vmatpush1.bf16.msra.mxu0 0
    %92 = vmatprep.subr.bf16.mxu0 0
    %93 = vmatpush1.bf16.msra.mxu0 0
    %94 = vmatprep.subr.bf16.mxu0 0
    %95 = vmatpush1.bf16.msra.mxu0 0
    %96 = vmatprep.subr.bf16.mxu0 0
    %97 = vmatpush1.bf16.msra.mxu0 0
    %98 = vmatprep.subr.bf16.mxu0 0
    %99 = vmatpush1.bf16.msra.mxu0 0
    %100 = vmatprep.subr.bf16.mxu0 0
    %101 = vmatpush1.bf16.msra.mxu0 0
    %102 = vmatprep.mubr.bf16.mxu0 0
    %103 = vmatmul.mubr.bf16.gmra.mrb[0].mxu0 %v68
    %v104 = vpop.f32.mrb[0].mxu0
    %v105 = vadd.f32 %v52, %v104
    %v106 = vpop.f32.mrb[0].mxu0
    %v107 = vpop.f32.mrb[0].mxu0
    %v108 = vpop.f32.mrb[0].mxu0
    %109 = vdwg.mxu0
    %110 = vmax.xlane.f32.xlu0 %v105
    %v111 = vpop.xlane.xlu0 %110
    %v112 = vsub.f32 %v105, %v111
    %v113 = vmul.f32 %v112, 1.442695
    %v114 = vpow.pop %v113
    %115 = vadd.xlane.f32.xlu0 %v114
    %v116 = vpop.xlane.xlu0 %115
    %v117 = vlog2.pop %v116
    %v118 = vmul.f32 %v117, 0.6931472
    %v119 = vadd.f32 %v111, %v118
    %v120 = vsub.f32 %v105, %v119
    %121 = vst [vmem:[%s3] sm:$0xff] %v120
    // Predicated region
    $region22: #{categorical_forward.1} parent=1 // pred_check
      _
    $region23: #{categorical_forward.1} parent=1 // pred_check_branch
      %123 = sbr.rel (0) target = $region25
    $region24: #{categorical_forward.1} parent=1 // pred_region
      _
    $region25: #{categorical_forward.1} parent=1 // pred_fallthru
      _
    // Predicated region
    $region26: #{categorical_forward.1} parent=1 // pred_check
      _
    $region27: #{categorical_forward.1} parent=1 // pred_check_branch
      %125 = sbr.rel (0) target = $region29
    $region28: #{categorical_forward.1} parent=1 // pred_region
      _
    $region29: #{categorical_forward.1} parent=1 // pred_fallthru
      _
    %126 = vsyncpa [#allocation3], 1
    %127 = vsyncpa [#allocation5], 1

</llo_original>
